<compile_context>
chip_gen: v7x
topology: tpu7x:2x2x1
jax: 0.10.0
libtpu: 0.0.40
codegen_flags: <defaults>
</compile_context>

<pallas_src>
import functools

import jax
import jax.numpy as jnp
from jax.experimental import pallas as pl
from jax.experimental.pallas import tpu as pltpu


# ~48 MiB of double-buffered in/out tiles: fits v7x's 64 MiB VMEM with
# headroom, well under v5e/v6e's 128 MiB physical VMEM.
_VMEM_TILE_BUDGET = 48 * 1024 * 1024
_VMEM_LIMIT_BYTES = 64 * 1024 * 1024
_MAX_BLOCK_ROWS = 1024


def _rmsnorm_kernel(x_ref, w_ref, o_ref, *, eps):
    # x_ref: (tm, H) input tile; w_ref: (1, H) f32 weight; o_ref: (tm, H).
    input_dtype = x_ref.dtype
    x32 = x_ref[...].astype(jnp.float32)
    variance = jnp.mean(x32 * x32, axis=-1, keepdims=True)
    xnorm = x32 * jax.lax.rsqrt(variance + eps)
    if input_dtype != jnp.float32:
        # Match PyTorch's intermediate downcast: hidden_states.to(input_dtype)
        # before multiplying by the float32 weight.
        xnorm = xnorm.astype(input_dtype).astype(jnp.float32)
    o_ref[...] = (w_ref[...].astype(jnp.float32) * xnorm).astype(o_ref.dtype)


def _pick_block_rows(rows, hidden, in_dtype, out_dtype):
    """Largest sublane-aligned row tile whose double-buffered in/out fits VMEM."""
    in_b = jnp.dtype(in_dtype).itemsize
    out_b = jnp.dtype(out_dtype).itemsize
    per_row = hidden * 2 * (in_b + out_b)  # 2x (input tile + output tile)
    tm = max(1, _VMEM_TILE_BUDGET // per_row)
    tm = min(tm, _MAX_BLOCK_ROWS)
    if tm >= rows:
        return rows  # single block covering all rows (full-dim block is legal)
    sub = 16 if in_b == 2 else 8  # native sublane packing for the input dtype
    return max((tm // sub) * sub, min(sub, rows))


def bit_rms_norm(hidden_states, weight, eps=1e-6, *, block_rows=None):
    """hidden_states: (..., hidden); weight: (hidden,) float32."""
    orig_shape = hidden_states.shape
    hidden = orig_shape[-1]
    x2d = hidden_states.reshape(-1, hidden)
    rows = x2d.shape[0]

    # Output dtype follows PyTorch promotion of (f32 weight) * (input_dtype x).
    out_dtype = jnp.promote_types(weight.dtype, hidden_states.dtype)

    tm = block_rows if block_rows is not None else _pick_block_rows(
        rows, hidden, x2d.dtype, out_dtype)

    w2d = weight.reshape(1, hidden)

    in_bytes = jnp.dtype(x2d.dtype).itemsize
    out_bytes = jnp.dtype(out_dtype).itemsize
    cost = pl.CostEstimate(
        flops=4 * rows * hidden,
        transcendentals=rows,
        bytes_accessed=rows * hidden * (in_bytes + out_bytes) + hidden * 4,
    )

    out = pl.pallas_call(
        functools.partial(_rmsnorm_kernel, eps=eps),
        out_shape=jax.ShapeDtypeStruct((rows, hidden), out_dtype),
        grid_spec=pltpu.PrefetchScalarGridSpec(
            num_scalar_prefetch=0,
            grid=(pl.cdiv(rows, tm),),
            in_specs=[
                pl.BlockSpec((tm, hidden), lambda i: (i, 0)),
                pl.BlockSpec((1, hidden), lambda i: (0, 0)),
            ],
            out_specs=pl.BlockSpec((tm, hidden), lambda i: (i, 0)),
        ),
        compiler_params=pltpu.CompilerParams(
            dimension_semantics=("parallel",),
            vmem_limit_bytes=_VMEM_LIMIT_BYTES,
        ),
        cost_estimate=cost,
    )(x2d, w2d)

    return out.reshape(orig_shape[:-1] + (hidden,))


if __name__ == "__main__":
    key = jax.random.PRNGKey(0)
    batch, seq, hidden = 2, 8, 256

    # nn.Parameter(torch.ones(hidden_size)) -> deterministic ones, float32.
    weight = jnp.ones((hidden,), dtype=jnp.float32)
    eps = 1e-6

    def reference(x):
        x32 = x.astype(jnp.float32)
        var = jnp.mean(x32 * x32, axis=-1, keepdims=True)
        return weight * (x32 * jax.lax.rsqrt(var + eps)).astype(x.dtype)

    # float32 path.
    x = jax.random.normal(key, (batch, seq, hidden), dtype=jnp.float32)
    out = jax.block_until_ready(bit_rms_norm(x, weight, eps))
    ref = reference(x)
    assert out.shape == ref.shape and out.dtype == ref.dtype
    assert jnp.allclose(out, ref, atol=1e-5, rtol=1e-5)

    # bfloat16 path (exercises the PyTorch-style intermediate downcast;
    # output promotes to float32 like weight * x.to(bf16) in PyTorch).
    xb = x.astype(jnp.bfloat16)
    outb = jax.block_until_ready(bit_rms_norm(xb, weight, eps))
    refb = reference(xb)
    assert outb.shape == refb.shape and outb.dtype == refb.dtype
    assert jnp.allclose(outb, refb, atol=1e-2, rtol=1e-2)

    print("KERNEL_OK")
</pallas_src>

<mosaic_0001>
module attributes {stable_mosaic.version = 11 : i64} {
  func.func @_rmsnorm_kernel(%arg0: i32, %arg1: memref<16x256xf32, #tpu.memory_space<vmem>>, %arg2: memref<1x256xf32, #tpu.memory_space<vmem>>, %arg3: memref<16x256xf32, #tpu.memory_space<vmem>>) attributes {dimension_semantics = [#tpu.dimension_semantics<parallel>], iteration_bounds = array<i64: 1>, scalar_prefetch = 0 : i64, scratch_operands = 0 : i64, tpu.core_type = #tpu.core_type<tc>, window_params = [{transform_indices = @transform_0, window_bounds = array<i64: 16, 256>}, {pipeline_mode = #tpu.pipeline_mode<synchronous>, transform_indices = @transform_1, window_bounds = array<i64: 1, 256>}, {transform_indices = @transform_2, window_bounds = array<i64: 16, 256>}]} {
    %c0 = arith.constant 0 : index
    %c0_0 = arith.constant 0 : index
    %0 = vector.load %arg1[%c0, %c0_0] : memref<16x256xf32, #tpu.memory_space<vmem>>, vector<16x256xf32>
    %1 = arith.mulf %0, %0 : vector<16x256xf32>
    %cst = arith.constant dense<0.000000e+00> : vector<16xf32>
    %2 = vector.multi_reduction <add>, %1, %cst [1] : vector<16x256xf32> to vector<16xf32>
    %3 = vector.shape_cast %2 : vector<16xf32> to vector<16x1xf32>
    %cst_1 = arith.constant 2.560000e+02 : f32
    %4 = vector.broadcast %cst_1 : f32 to vector<16x1xf32>
    %5 = arith.divf %3, %4 : vector<16x1xf32>
    %cst_2 = arith.constant 9.99999997E-7 : f32
    %6 = vector.broadcast %cst_2 : f32 to vector<16x1xf32>
    %7 = arith.addf %5, %6 : vector<16x1xf32>
    %8 = math.rsqrt %7 : vector<16x1xf32>
    %9 = vector.broadcast %8 : vector<16x1xf32> to vector<16x256xf32>
    %10 = arith.mulf %0, %9 : vector<16x256xf32>
    %c0_3 = arith.constant 0 : index
    %c0_4 = arith.constant 0 : index
    %11 = vector.load %arg2[%c0_3, %c0_4] : memref<1x256xf32, #tpu.memory_space<vmem>>, vector<1x256xf32>
    %12 = vector.broadcast %11 : vector<1x256xf32> to vector<16x256xf32>
    %13 = arith.mulf %12, %10 : vector<16x256xf32>
    %c0_5 = arith.constant 0 : index
    %c0_6 = arith.constant 0 : index
    %14 = vector.load %arg3[%c0_5, %c0_6] : memref<16x256xf32, #tpu.memory_space<vmem>>, vector<16x256xf32>
    tpu.vector_store %arg3[%c0_5, %c0_6], %13 {strides = array<i32>} : memref<16x256xf32, #tpu.memory_space<vmem>>, vector<16x256xf32>,
    return
  }
  func.func @transform_0(%arg0: i32) -> (i32, i32) {
    %c0_i32 = arith.constant 0 : i32
    %c0_i32_0 = arith.constant 0 : i32
    return %arg0, %c0_i32 : i32, i32
  }
  func.func @transform_1(%arg0: i32) -> (i32, i32) {
    %c0_i32 = arith.constant 0 : i32
    %c0_i32_0 = arith.constant 0 : i32
    %c0_i32_1 = arith.constant 0 : i32
    return %c0_i32, %c0_i32_0 : i32, i32
  }
  func.func @transform_2(%arg0: i32) -> (i32, i32) {
    %c0_i32 = arith.constant 0 : i32
    %c0_i32_0 = arith.constant 0 : i32
    return %arg0, %c0_i32 : i32, i32
  }
}

</mosaic_0001>

<llo_original>
// kernel: tpu_custom_call.1
$region0: #{tpu_custom_call.1}
  #allocation0 [shape = 'u32[]', space=smem, size = 0x4, offset = 0x4, fixed_abs, tag = 'smem constant byte address 0x4 - core index']
  #allocation1 [shape = 'u32[144,128]{1,0:T(1,128)}', space=vmem, size = 0x12000, scoped, tag = 'internal scratch']
  %s0 = inlined_call_operand.hbm [shape: f32[16,256], index: 0, kind: input, shape index: {}]
  %s1 = inlined_call_operand.hbm [shape: f32[1,256], index: 1, kind: input, shape index: {}]
  %s2 = inlined_call_operand.hbm [shape: f32[16,256], index: 2, kind: output, shape index: {}]
  %s3 = sld [smem:[#allocation0]]
  $region26: #{tpu_custom_call.1} parent=0
    _
  %s5 = ssub.s32 1, %s3
  %s6 = scalar_select 0, %s5, %s3
  $region1: #{tpu_custom_call.1} parent=0
    #allocation2 [shape = 'u8[16384]{0}', space=vmem, size = 0x4000, scoped, tag = 'input window, operand 0, single buffered']
    #allocation3 [shape = 's32[1]{0}', space=sflag, size = 0x4, scoped, tag = 'scoped memory for tpu_custom_call.1']
    #allocation4 [shape = 's32[1]{0}', space=sflag, size = 0x4, scoped, tag = 'scoped memory for tpu_custom_call.1']
    #allocation5 [shape = 'u8[1024]{0}', space=vmem, size = 0x400, scoped, tag = 'input window, operand 1, single buffered']
    #allocation6 [shape = 's32[1]{0}', space=sflag, size = 0x4, scoped, tag = 'scoped memory for tpu_custom_call.1']
    #allocation7 [shape = 'u8[16384]{0}', space=vmem, size = 0x4000, scoped, tag = 'output window, operand 0, single buffered']
    %7 = vsyncpa [#allocation3], 0
    %8 = vsyncpa [#allocation6], 0
    %9 = vsyncpa [#allocation4], 0
    // Predicated region
    $region2: #{tpu_custom_call.1} parent=1 // pred_check
      _
    $region3: #{tpu_custom_call.1} parent=1 // pred_check_branch
      %11 = sbr.rel (0) target = $region5
    $region4: #{tpu_custom_call.1} parent=1 // pred_region
      %s13 = ssub.s32 512, 512
      %14 = vsyncadd [#allocation3], %s13
      %s15 = sshll.u32 [#allocation2], 4
      %s16 = int_to_ptr.vmem [resolvable:$true] %s15
      %21 = dma.hbm_to_vmem [thread:$0]  %s0, 512, %s16, [#allocation3], 256, 256, 16
    $region5: #{tpu_custom_call.1} parent=1 // pred_fallthru
      _
    // Predicated region
    $region6: #{tpu_custom_call.1} parent=1 // pred_check
      _
    $region7: #{tpu_custom_call.1} parent=1 // pred_check_branch
      %23 = sbr.rel (0) target = $region9
    $region8: #{tpu_custom_call.1} parent=1 // pred_region
      %s25 = ssub.s32 32, 32
      %26 = vsyncadd [#allocation6], %s25
      %s28 = sshll.u32 [#allocation5], 4
      %s29 = int_to_ptr.vmem [resolvable:$true] %s28
      %31 = dma.hbm_to_vmem [thread:$0]  %s1, 32, %s29, [#allocation6]
    $region9: #{tpu_custom_call.1} parent=1 // pred_fallthru
      _
    // Predicated region
    $region10: #{tpu_custom_call.1} parent=1 // pred_check
      _
    $region11: #{tpu_custom_call.1} parent=1 // pred_check_branch
      %33 = sbr.rel (0) target = $region13
    $region12: #{tpu_custom_call.1} parent=1 // pred_region
      %34 = dma.done [#allocation3], 512
    $region13: #{tpu_custom_call.1} parent=1 // pred_fallthru
      _
    // Predicated region
    $region14: #{tpu_custom_call.1} parent=1 // pred_check
      _
    $region15: #{tpu_custom_call.1} parent=1 // pred_check_branch
      %36 = sbr.rel (0) target = $region17
    $region16: #{tpu_custom_call.1} parent=1 // pred_region
      %37 = dma.done [#allocation6], 32
    $region17: #{tpu_custom_call.1} parent=1 // pred_fallthru
      _
    %v38 = vld [vmem:[#allocation2] sm:$0xff]
    %v39 = vld [vmem:[#allocation2 + $0x8] sm:$0xff]
    %v40 = vld [vmem:[#allocation2 + $0x10] sm:$0xff]
    %v41 = vld [vmem:[#allocation2 + $0x18] sm:$0xff]
    %v42 = vmul.f32 %v38, %v38
    %v43 = vmul.f32 %v39, %v39
    %v44 = vmul.f32 %v40, %v40
    %v45 = vmul.f32 %v41, %v41
    %v46 = vadd.f32 %v42, %v43
    %47 = vadd.xlane.f32.xlu0 %v46
    %v48 = vpop.xlane.xlu0 %47
    %v49 = vadd.f32 %v44, %v45
    %50 = vadd.xlane.f32.xlu0 %v49
    %v51 = vpop.xlane.xlu0 %50
    %v52 = vrcp.pop 256.0
    %v53 = vmul.f32 %v48, %v52
    %v54 = vmul.f32 %v51, %v52
    %v55 = vadd.f32 %v53, 1e-06
    %v56 = vadd.f32 %v54, 1e-06
    %v57 = vrsqrt.pop %v55
    %v58 = vrsqrt.pop %v56
    %v59 = vmul.f32 %v38, %v57
    %v60 = vmul.f32 %v39, %v57
    %v61 = vmul.f32 %v40, %v58
    %v62 = vmul.f32 %v41, %v58
    %v63 = vld [vmem:[#allocation5] sm:$0x3]
    %v65 = vlaneseq
    %v66 = vshrl.u32 %v65, 7
    %v67 = vsub.s32 0, %v66
    %v68 = vrot.slane %v63, %v67
    %v69 = vlaneseq
    %v70 = vshrl.u32 %v69, 7
    %v71 = vsub.s32 1, %v70
    %v72 = vrot.slane %v63, %v71
    %v75 = vmul.f32 %v68, %v59
    %v76 = vmul.f32 %v72, %v60
    %v77 = vmul.f32 %v68, %v61
    %v78 = vmul.f32 %v72, %v62
    %79 = vst [vmem:[#allocation7] sm:$0xff] %v75
    %80 = vst [vmem:[#allocation7 + $0x8] sm:$0xff] %v76
    %81 = vst [vmem:[#allocation7 + $0x10] sm:$0xff] %v77
    %82 = vst [vmem:[#allocation7 + $0x18] sm:$0xff] %v78
    // Predicated region
    $region18: #{tpu_custom_call.1} parent=1 // pred_check
      _
    $region19: #{tpu_custom_call.1} parent=1 // pred_check_branch
      %84 = sbr.rel (0) target = $region21
    $region20: #{tpu_custom_call.1} parent=1 // pred_region
      %s86 = ssub.s32 512, 512
      %87 = vsyncadd [#allocation4], %s86
      %s88 = sshll.u32 [#allocation7], 4
      %s89 = int_to_ptr.vmem [resolvable:$true] %s88
      %94 = dma.vmem_to_hbm [thread:$0]  %s89, 512, %s2, [#allocation4], 256, 256, 16
    $region21: #{tpu_custom_call.1} parent=1 // pred_fallthru
      _
    // Predicated region
    $region22: #{tpu_custom_call.1} parent=1 // pred_check
      _
    $region23: #{tpu_custom_call.1} parent=1 // pred_check_branch
      %96 = sbr.rel (0) target = $region25
    $region24: #{tpu_custom_call.1} parent=1 // pred_region
      %97 = dma.done [#allocation4], 512
    $region25: #{tpu_custom_call.1} parent=1 // pred_fallthru
      _
    %98 = vsyncpa [#allocation3], 1
    %99 = vsyncpa [#allocation6], 1
    %100 = vsyncpa [#allocation4], 1

</llo_original>
